<compile_context>
chip_gen: v5e
topology: v5e:2x2
jax: 0.10.0
libtpu: 0.0.40
codegen_flags: <defaults>
</compile_context>

<pallas_src>
import functools

import jax
import jax.numpy as jnp
import numpy as np
from jax import lax
from jax.experimental import pallas as pl
from jax.experimental.pallas import tpu as pltpu

_OUT_W = 128  # lane-dense output width; lanes 0/1/2 hold P/R/F per batch row


def _bertscore_kernel(hyp_ref, reft_ref, hidf_ref, ridf_ref, out_ref):
    # hyp_ref : (Bt, Lhp, Dp) bf16, pre-L2-normalized; masked/padded rows == 0
    # reft_ref: (Bt, Dp, Lrp) bf16, pre-normalized & pre-transposed; masked cols == 0
    # hidf_ref: (Bt, 1, Lhp)  f32, idf / sum(idf), lane-major
    # ridf_ref: (Bt, 1, Lrp)  f32, idf / sum(idf), lane-major
    # out_ref : (1, Bt, 128)  f32, lanes 0/1/2 = P/R/F

    # Cosine-similarity batched matmul: canonical [M,K]x[K,N] per batch row,
    # bf16 operands with f32 accumulation on the MXU.
    sim = jnp.einsum("bhd,bdr->bhr", hyp_ref[...], reft_ref[...],
                     preferred_element_type=jnp.float32)       # (Bt, Lhp, Lrp)

    # Greedy matching.  Masked / padded rows & cols of sim are exactly zero,
    # so (as in bert_score's padded-batch greedy_cos_idf) they enter the max
    # as zeros; their idf weight is zero so they never contribute to P/R.
    word_p = jnp.max(sim, axis=2)                              # (Bt, Lhp)
    word_r = jnp.max(sim, axis=1)                              # (Bt, Lrp)

    hidf = jnp.squeeze(hidf_ref[...], axis=1)                  # (Bt, Lhp)
    ridf = jnp.squeeze(ridf_ref[...], axis=1)                  # (Bt, Lrp)

    p = jnp.sum(word_p * hidf, axis=-1, keepdims=True)         # (Bt, 1)
    r = jnp.sum(word_r * ridf, axis=-1, keepdims=True)         # (Bt, 1)

    denom = p + r
    safe = jnp.where(denom > 0.0, denom, 1.0)                  # no inf/nan branch
    f = jnp.where(denom > 0.0, 2.0 * p * r / safe, 0.0)

    cols = lax.broadcasted_iota(jnp.int32,
                                (out_ref.shape[1], out_ref.shape[2]), 1)
    vals = jnp.where(cols == 0, p,
           jnp.where(cols == 1, r,
           jnp.where(cols == 2, f, 0.0)))                      # (Bt, 128)
    out_ref[...] = vals[None]


def _pad_to(x, axis, mult):
    size = x.shape[axis]
    pad = (-size) % mult
    if pad == 0:
        return x
    widths = [(0, 0)] * x.ndim
    widths[axis] = (0, pad)
    return jnp.pad(x, widths)


def _vmem_limit_bytes(block_b, Lhp, Lrp, Dp):
    """Scoped-VMEM budget: double-buffered blocks + f32 sim + headroom,
    capped below physical VMEM for the current chip generation."""
    bf16, f32 = 2, 4
    per_step = (block_b * Lhp * Dp * bf16        # hyp block
                + block_b * Dp * Lrp * bf16      # ref_t block
                + block_b * Lhp * f32            # hidf block
                + block_b * Lrp * f32            # ridf block
                + block_b * _OUT_W * f32)        # out block
    sim = block_b * Lhp * Lrp * f32              # in-kernel f32 intermediate
    need = 2 * per_step + sim + (4 << 20)
    try:
        cap = pltpu.get_tpu_info().vmem_capacity_bytes
    except Exception:
        cap = 64 << 20                           # v7x physical VMEM (worst case)
    return int(min(0.85 * cap, max(32 << 20, need)))


@functools.partial(jax.jit, static_argnames=("block_b",))
def bertscore_forward(hyp_emb, ref_emb, hyp_idf, ref_idf,
                      hyp_mask, ref_mask, labels, *, block_b=8):
    """Greedy-cosine BERTScore (P, R, F) + MSE(F, labels).

    hyp_emb/ref_emb: (B, L, D) float32 token embeddings from the encoder.
    hyp_idf/ref_idf: (B, L) idf weights.  hyp_mask/ref_mask: (B, L) 0/1 masks.
    labels: (B,) regression targets for the MSE loss on F1.
    Pick block_b so that padded_B // block_b >= 2 on v7x (feeds both TCs).
    """
    B, Lh, D = hyp_emb.shape
    _, Lr, _ = ref_emb.shape

    # --- wrapper-side preprocessing (fuses into one memory-bound XLA pass) ---
    # Fold the attention mask and L2-normalize in f32 here; cast to bf16 for
    # HBM traffic / MXU operands.  A zero row stays a zero row, which
    # reproduces the `sim * (hmask * rmask)` zeroing of the reference.
    hyp_m = hyp_emb * hyp_mask[..., None]
    ref_m = ref_emb * ref_mask[..., None]
    hyp_n = (hyp_m * lax.rsqrt(jnp.sum(hyp_m * hyp_m, -1, keepdims=True) + 1e-12)
             ).astype(jnp.bfloat16)
    ref_n = (ref_m * lax.rsqrt(jnp.sum(ref_m * ref_m, -1, keepdims=True) + 1e-12)
             ).astype(jnp.bfloat16)

    # Pre-normalize the idf weights once (per-batch constants).
    hidf = hyp_idf * hyp_mask
    ridf = ref_idf * ref_mask
    hidf_n = hidf / (jnp.sum(hidf, -1, keepdims=True) + 1e-12)
    ridf_n = ridf / (jnp.sum(ridf, -1, keepdims=True) + 1e-12)

    # Layout padding: D -> 128 (lanes / MXU K), Lh -> 16 (bf16 sublanes),
    # Lr -> 128 (MXU N / lane dim of sim & ridf), B -> block_b.  Padded tokens
    # look exactly like attention-masked tokens (zero row, zero idf).
    hyp_n = _pad_to(_pad_to(hyp_n, 2, 128), 1, 16)
    ref_n = _pad_to(_pad_to(ref_n, 2, 128), 1, 128)
    hidf_n = _pad_to(hidf_n, 1, 16)
    ridf_n = _pad_to(ridf_n, 1, 128)
    hyp_n = _pad_to(hyp_n, 0, block_b)
    ref_n = _pad_to(ref_n, 0, block_b)
    hidf_n = _pad_to(hidf_n, 0, block_b)
    ridf_n = _pad_to(ridf_n, 0, block_b)

    Bp, Lhp, Dp = hyp_n.shape
    _, Lrp, _ = ref_n.shape

    # Pre-transpose ref so the kernel contraction is canonical [M,K]x[K,N].
    ref_t = jnp.swapaxes(ref_n, 1, 2)              # (Bp, Dp, Lrp)

    # Lane-major idf layout (1 sublane x L lanes per batch row).
    hidf_k = hidf_n[:, None, :]                    # (Bp, 1, Lhp)
    ridf_k = ridf_n[:, None, :]                    # (Bp, 1, Lrp)

    n_steps = Bp // block_b
    out = pl.pallas_call(
        _bertscore_kernel,
        out_shape=jax.ShapeDtypeStruct((n_steps, block_b, _OUT_W), jnp.float32),
        grid_spec=pltpu.PrefetchScalarGridSpec(
            num_scalar_prefetch=0,
            grid=(n_steps,),
            in_specs=[
                pl.BlockSpec((block_b, Lhp, Dp), lambda i: (i, 0, 0)),
                pl.BlockSpec((block_b, Dp, Lrp), lambda i: (i, 0, 0)),
                pl.BlockSpec((block_b, 1, Lhp), lambda i: (i, 0, 0)),
                pl.BlockSpec((block_b, 1, Lrp), lambda i: (i, 0, 0)),
            ],
            out_specs=pl.BlockSpec((1, block_b, _OUT_W), lambda i: (i, 0, 0)),
        ),
        compiler_params=pltpu.CompilerParams(
            # No resident accumulator -> the batch axis is truly parallel
            # (uses both TensorCores on v7x when n_steps >= 2).
            dimension_semantics=("parallel",),
            # Explicit scoped-VMEM budget from actual block sizes (default
            # double-buffering kept; depth-2 already hides DMA here).
            vmem_limit_bytes=_vmem_limit_bytes(block_b, Lhp, Lrp, Dp),
        ),
    )(hyp_n, ref_t, hidf_k, ridf_k)

    out = out.reshape(Bp, _OUT_W)
    p = out[:B, 0]
    r = out[:B, 1]
    f = out[:B, 2]
    loss = jnp.mean((f - labels) ** 2)             # torch.nn.MSELoss (mean)
    return {"p": p, "r": r, "f": f, "loss": loss}


def _reference(hyp_emb, ref_emb, hyp_idf, ref_idf, hyp_mask, ref_mask, labels,
               mimic_bf16):
    """Pure-JAX greedy_cos_idf + MSE.  Masked / padded positions contribute
    sim == 0 to the greedy max (as in bert_score's padded batches), hence the
    clamp of the per-token maxima at 0.  With mimic_bf16=True the normalized
    embeddings are rounded to bf16 exactly like the kernel's MXU operands."""
    hyp_e = hyp_emb * hyp_mask[..., None]
    ref_e = ref_emb * ref_mask[..., None]
    hyp_n = hyp_e * lax.rsqrt(jnp.sum(hyp_e * hyp_e, -1, keepdims=True) + 1e-12)
    ref_n = ref_e * lax.rsqrt(jnp.sum(ref_e * ref_e, -1, keepdims=True) + 1e-12)
    if mimic_bf16:
        hyp_n = hyp_n.astype(jnp.bfloat16)
        ref_n = ref_n.astype(jnp.bfloat16)
    sim = jnp.einsum("bhd,brd->bhr", hyp_n, ref_n,
                     preferred_element_type=jnp.float32)
    sim = sim * (hyp_mask[:, :, None] * ref_mask[:, None, :])
    word_p = jnp.maximum(sim.max(axis=2), 0.0)      # (B, Lh)
    word_r = jnp.maximum(sim.max(axis=1), 0.0)      # (B, Lr)
    hidf = hyp_idf * hyp_mask
    ridf = ref_idf * ref_mask
    P = (word_p * hidf / (hidf.sum(-1, keepdims=True) + 1e-12)).sum(-1)
    R = (word_r * ridf / (ridf.sum(-1, keepdims=True) + 1e-12)).sum(-1)
    denom = P + R
    F = jnp.where(denom > 0, 2 * P * R / jnp.where(denom > 0, denom, 1.0), 0.0)
    loss = jnp.mean((F - labels) ** 2)
    return P, R, F, loss


if __name__ == "__main__":
    B, Lh, Lr, D, VOCAB = 4, 8, 8, 32, 64
    CLS_ID, SEP_ID = 1, 2

    key = jax.random.PRNGKey(0)
    k_emb, k_hyp, k_ref, k_lab = jax.random.split(key, 4)

    # TODO(synk): the HuggingFace BERT encoder + adapter + tokenizer are not
    # implemented; a deterministic token-embedding lookup stands in for the
    # model forward.
    emb_table = jax.random.normal(k_emb, (VOCAB, D), dtype=jnp.float32) * 0.02

    # synthetic token ids: [CLS] w ... w [SEP]
    hyp_ids = jax.random.randint(k_hyp, (B, Lh), 3, VOCAB)
    ref_ids = jax.random.randint(k_ref, (B, Lr), 3, VOCAB)
    hyp_ids = hyp_ids.at[:, 0].set(CLS_ID).at[:, -1].set(SEP_ID)
    ref_ids = ref_ids.at[:, 0].set(CLS_ID).at[:, -1].set(SEP_ID)

    # embedding lookup (glue; stands in for the BERT encoder forward)
    hyp_emb = emb_table[hyp_ids]            # (B, Lh, D)
    ref_emb = emb_table[ref_ids]            # (B, Lr, D)

    # attention masks (some padded positions to exercise masking)
    hyp_mask = jnp.ones((B, Lh), jnp.float32).at[1, -1].set(0.0)
    ref_mask = jnp.ones((B, Lr), jnp.float32).at[2, -2:].set(0.0)

    # idf dict: default 1.0, CLS/SEP -> 0 (padding zeroed via the mask)
    hyp_idf = jnp.where((hyp_ids == CLS_ID) | (hyp_ids == SEP_ID), 0.0, 1.0)
    ref_idf = jnp.where((ref_ids == CLS_ID) | (ref_ids == SEP_ID), 0.0, 1.0)

    labels = jax.random.uniform(k_lab, (B,), dtype=jnp.float32)

    # block_b=2 -> 2 grid steps (exercises the multi-step parallel batch axis
    # and the block_b < 8 output layout).
    out = bertscore_forward(hyp_emb, ref_emb, hyp_idf, ref_idf,
                            hyp_mask, ref_mask, labels, block_b=2)
    jax.block_until_ready(out)

    # Tight check vs a pure-JAX reference mimicking the kernel's bf16 MXU path.
    P_bf, R_bf, F_bf, loss_bf = _reference(
        hyp_emb, ref_emb, hyp_idf, ref_idf, hyp_mask, ref_mask, labels,
        mimic_bf16=True)
    np.testing.assert_allclose(np.asarray(out["p"]), np.asarray(P_bf),
                               rtol=1e-3, atol=1e-3)
    np.testing.assert_allclose(np.asarray(out["r"]), np.asarray(R_bf),
                               rtol=1e-3, atol=1e-3)
    np.testing.assert_allclose(np.asarray(out["f"]), np.asarray(F_bf),
                               rtol=1e-3, atol=1e-3)
    np.testing.assert_allclose(np.asarray(out["loss"]), np.asarray(loss_bf),
                               rtol=1e-3, atol=1e-3)

    # Loose semantic check vs the full-f32 formulation (only the normalized
    # embeddings are rounded to bf16 -> O(1e-3) error).
    P32, R32, F32, loss32 = _reference(
        hyp_emb, ref_emb, hyp_idf, ref_idf, hyp_mask, ref_mask, labels,
        mimic_bf16=False)
    np.testing.assert_allclose(np.asarray(out["p"]), np.asarray(P32), atol=2e-2)
    np.testing.assert_allclose(np.asarray(out["r"]), np.asarray(R32), atol=2e-2)
    np.testing.assert_allclose(np.asarray(out["f"]), np.asarray(F32), atol=2e-2)
    np.testing.assert_allclose(np.asarray(out["loss"]), np.asarray(loss32),
                               atol=4e-2)

    print("KERNEL_OK")
</pallas_src>

<mosaic_0001>
module attributes {stable_mosaic.version = 11 : i64} {
  func.func @_bertscore_kernel(%arg0: i32, %arg1: memref<2x16x128xbf16, #tpu.memory_space<vmem>>, %arg2: memref<2x128x128xbf16, #tpu.memory_space<vmem>>, %arg3: memref<2x1x16xf32, #tpu.memory_space<vmem>>, %arg4: memref<2x1x128xf32, #tpu.memory_space<vmem>>, %arg5: memref<1x2x128xf32, #tpu.memory_space<vmem>>) attributes {dimension_semantics = [#tpu.dimension_semantics<parallel>], iteration_bounds = array<i64: 2>, scalar_prefetch = 0 : i64, scratch_operands = 0 : i64, tpu.core_type = #tpu.core_type<tc>, window_params = [{transform_indices = @transform_0, window_bounds = array<i64: 2, 16, 128>}, {transform_indices = @transform_1, window_bounds = array<i64: 2, 128, 128>}, {transform_indices = @transform_2, window_bounds = array<i64: 2, 1, 16>}, {transform_indices = @transform_3, window_bounds = array<i64: 2, 1, 128>}, {transform_indices = @transform_4, window_bounds = array<i64: 1, 2, 128>}]} {
    %c0 = arith.constant 0 : index
    %c0_0 = arith.constant 0 : index
    %c0_1 = arith.constant 0 : index
    %0 = vector.load %arg1[%c0, %c0_0, %c0_1] : memref<2x16x128xbf16, #tpu.memory_space<vmem>>, vector<2x16x128xbf16>
    %c0_2 = arith.constant 0 : index
    %c0_3 = arith.constant 0 : index
    %c0_4 = arith.constant 0 : index
    %1 = vector.load %arg2[%c0_2, %c0_3, %c0_4] : memref<2x128x128xbf16, #tpu.memory_space<vmem>>, vector<2x128x128xbf16>
    "tpu.trace_start"() <{level = 10 : i32, message = "bhd,bdr->bhr"}> : () -> ()
    %cst = arith.constant dense<0.000000e+00> : vector<2x16x128xf32>
    %2 = tpu.matmul %0, %1, %cst {dimension_numbers = #tpu.dot_dimension_numbers<[2], [1], [1], [2], [0, 0, 0, 1, 1, 2], [0], [0]>} : vector<2x16x128xbf16>, vector<2x128x128xbf16>, vector<2x16x128xf32> -> vector<2x16x128xf32>
    "tpu.trace_stop"() : () -> ()
    %cst_5 = arith.constant dense<0xFF800000> : vector<2x16xf32>
    %3 = vector.multi_reduction <maximumf>, %2, %cst_5 [2] : vector<2x16x128xf32> to vector<2x16xf32>
    %cst_6 = arith.constant dense<0xFF800000> : vector<2x128xf32>
    %4 = vector.multi_reduction <maximumf>, %2, %cst_6 [1] : vector<2x16x128xf32> to vector<2x128xf32>
    %c0_7 = arith.constant 0 : index
    %c0_8 = arith.constant 0 : index
    %c0_9 = arith.constant 0 : index
    %5 = vector.load %arg3[%c0_7, %c0_8, %c0_9] : memref<2x1x16xf32, #tpu.memory_space<vmem>>, vector<2x1x16xf32>
    %6 = vector.shape_cast %5 : vector<2x1x16xf32> to vector<2x16xf32>
    %c0_10 = arith.constant 0 : index
    %c0_11 = arith.constant 0 : index
    %c0_12 = arith.constant 0 : index
    %7 = vector.load %arg4[%c0_10, %c0_11, %c0_12] : memref<2x1x128xf32, #tpu.memory_space<vmem>>, vector<2x1x128xf32>
    %8 = vector.shape_cast %7 : vector<2x1x128xf32> to vector<2x128xf32>
    %9 = arith.mulf %3, %6 : vector<2x16xf32>
    %cst_13 = arith.constant dense<0.000000e+00> : vector<2xf32>
    %10 = vector.multi_reduction <add>, %9, %cst_13 [1] : vector<2x16xf32> to vector<2xf32>
    %11 = vector.shape_cast %10 : vector<2xf32> to vector<2x1xf32>
    %12 = arith.mulf %4, %8 : vector<2x128xf32>
    %cst_14 = arith.constant dense<0.000000e+00> : vector<2xf32>
    %13 = vector.multi_reduction <add>, %12, %cst_14 [1] : vector<2x128xf32> to vector<2xf32>
    %14 = vector.shape_cast %13 : vector<2xf32> to vector<2x1xf32>
    %15 = arith.addf %11, %14 : vector<2x1xf32>
    %cst_15 = arith.constant 0.000000e+00 : f32
    %16 = vector.broadcast %cst_15 : f32 to vector<2x1xf32>
    %17 = arith.cmpf ogt, %15, %16 : vector<2x1xf32>
    %cst_16 = arith.constant 1.000000e+00 : f32
    %18 = vector.broadcast %cst_16 : f32 to vector<2x1xf32>
    %19 = arith.select %17, %15, %18 : vector<2x1xi1>, vector<2x1xf32>
    %cst_17 = arith.constant 0.000000e+00 : f32
    %20 = vector.broadcast %cst_17 : f32 to vector<2x1xf32>
    %21 = arith.cmpf ogt, %15, %20 : vector<2x1xf32>
    %cst_18 = arith.constant 2.000000e+00 : f32
    %22 = vector.broadcast %cst_18 : f32 to vector<2x1xf32>
    %23 = arith.mulf %22, %11 : vector<2x1xf32>
    %24 = arith.mulf %23, %14 : vector<2x1xf32>
    %25 = arith.divf %24, %19 : vector<2x1xf32>
    %cst_19 = arith.constant 0.000000e+00 : f32
    %26 = vector.broadcast %cst_19 : f32 to vector<2x1xf32>
    %27 = arith.select %21, %25, %26 : vector<2x1xi1>, vector<2x1xf32>
    %28 = tpu.iota {dimensions = array<i32: 1>} : vector<2x128xi32>
    %c0_i32 = arith.constant 0 : i32
    %29 = vector.broadcast %c0_i32 : i32 to vector<2x128xi32>
    %30 = arith.cmpi eq, %28, %29 : vector<2x128xi32>
    %c1_i32 = arith.constant 1 : i32
    %31 = vector.broadcast %c1_i32 : i32 to vector<2x128xi32>
    %32 = arith.cmpi eq, %28, %31 : vector<2x128xi32>
    %c2_i32 = arith.constant 2 : i32
    %33 = vector.broadcast %c2_i32 : i32 to vector<2x128xi32>
    %34 = arith.cmpi eq, %28, %33 : vector<2x128xi32>
    %cst_20 = arith.constant 0.000000e+00 : f32
    %35 = vector.shape_cast %27 : vector<2x1xf32> to vector<2x1xf32>
    %36 = vector.broadcast %35 : vector<2x1xf32> to vector<2x128xf32>
    %37 = vector.broadcast %cst_20 : f32 to vector<2x128xf32>
    %38 = arith.select %34, %36, %37 : vector<2x128xi1>, vector<2x128xf32>
    %39 = vector.shape_cast %14 : vector<2x1xf32> to vector<2x1xf32>
    %40 = vector.broadcast %39 : vector<2x1xf32> to vector<2x128xf32>
    %41 = arith.select %32, %40, %38 : vector<2x128xi1>, vector<2x128xf32>
    %42 = vector.shape_cast %11 : vector<2x1xf32> to vector<2x1xf32>
    %43 = vector.broadcast %42 : vector<2x1xf32> to vector<2x128xf32>
    %44 = arith.select %30, %43, %41 : vector<2x128xi1>, vector<2x128xf32>
    %45 = vector.shape_cast %44 : vector<2x128xf32> to vector<1x2x128xf32>
    %c0_21 = arith.constant 0 : index
    %c0_22 = arith.constant 0 : index
    %c0_23 = arith.constant 0 : index
    %46 = vector.load %arg5[%c0_21, %c0_22, %c0_23] : memref<1x2x128xf32, #tpu.memory_space<vmem>>, vector<1x2x128xf32>
    tpu.vector_store %arg5[%c0_21, %c0_22, %c0_23], %45 {strides = array<i32>} : memref<1x2x128xf32, #tpu.memory_space<vmem>>, vector<1x2x128xf32>,
    return
  }
  func.func @transform_0(%arg0: i32) -> (i32, i32, i32) {
    %c0_i32 = arith.constant 0 : i32
    %c0_i32_0 = arith.constant 0 : i32
    %c0_i32_1 = arith.constant 0 : i32
    return %arg0, %c0_i32, %c0_i32_0 : i32, i32, i32
  }
  func.func @transform_1(%arg0: i32) -> (i32, i32, i32) {
    %c0_i32 = arith.constant 0 : i32
    %c0_i32_0 = arith.constant 0 : i32
    %c0_i32_1 = arith.constant 0 : i32
    return %arg0, %c0_i32, %c0_i32_0 : i32, i32, i32
  }
  func.func @transform_2(%arg0: i32) -> (i32, i32, i32) {
    %c0_i32 = arith.constant 0 : i32
    %c0_i32_0 = arith.constant 0 : i32
    %c0_i32_1 = arith.constant 0 : i32
    return %arg0, %c0_i32, %c0_i32_0 : i32, i32, i32
  }
  func.func @transform_3(%arg0: i32) -> (i32, i32, i32) {
    %c0_i32 = arith.constant 0 : i32
    %c0_i32_0 = arith.constant 0 : i32
    %c0_i32_1 = arith.constant 0 : i32
    return %arg0, %c0_i32, %c0_i32_0 : i32, i32, i32
  }
  func.func @transform_4(%arg0: i32) -> (i32, i32, i32) {
    %c0_i32 = arith.constant 0 : i32
    %c0_i32_0 = arith.constant 0 : i32
    %c0_i32_1 = arith.constant 0 : i32
    return %arg0, %c0_i32, %c0_i32_0 : i32, i32, i32
  }
}

</mosaic_0001>

<llo_original>
// kernel: bertscore_forward.1
$region0: #{bertscore_forward.1}
  #allocation0 [shape = 'u32[]', space=smem, size = 0x4, offset = 0x4, fixed_abs, tag = 'smem constant byte address 0x4 - core index']
  #allocation1 [shape = 'u32[72,128]{1,0:T(1,128)}', space=vmem, size = 0x9000, scoped, tag = 'internal scratch']
  %s0 = inlined_call_operand.vmem [shape: bf16[4,16,128], index: 0, kind: input, shape index: {}]
  %s1 = inlined_call_operand.vmem [shape: bf16[4,128,128], index: 1, kind: input, shape index: {}]
  %s2 = inlined_call_operand.vmem [shape: f32[4,1,16], index: 2, kind: input, shape index: {}]
  %s3 = inlined_call_operand.vmem [shape: f32[4,1,128], index: 3, kind: input, shape index: {}]
  %s4 = inlined_call_operand.vmem [shape: f32[2,2,128], index: 4, kind: output, shape index: {}]
  %s5 = sld [smem:[#allocation0]]
  $region49: #{bertscore_forward.1} parent=0
    _
  %s7 = ssub.s32 1, %s5
  %s8 = scalar_select 0, %s7, %s5
  loop: start=0, step=1, limit=4
  $region2: #{bertscore_forward.1} parent=0 // loop_pre_header
    _
  $region3: #{bertscore_forward.1} parent=0 // loop_header
    %s10 = sphi 0, %s14
    %p11 = scmp.ge.s32.totalorder %s10, 4
    %s20 = sphi 0, %s22
    %s23 = sphi 0, %s20
    %s24 = sphi 0, %s23
    %s40 = sphi 0, %s24
    %s46 = sphi 0, %s48
    %s49 = sphi 0, %s46
    %s50 = sphi 0, %s49
    %s66 = sphi 0, %s50
    %s72 = sphi 0, %s74
    %s75 = sphi 0, %s72
    %s76 = sphi 0, %s75
    %s92 = sphi 0, %s76
    %s98 = sphi 0, %s100
    %s101 = sphi 0, %s98
    %s102 = sphi 0, %s101
    %s118 = sphi 0, %s102
    %s124 = sphi 0, %s126
    %s127 = sphi 0, %s124
    %s128 = sphi 0, %s127
    %s144 = sphi 0, %s128
  $region4: #{bertscore_forward.1} parent=0 // loop_header_branch
    %13 = sbr.rel (%p11) target = $region8
  $region5: #{bertscore_forward.1} parent=0 // loop_body
    %s15 = ssub.s32 %s10, 1
    %s16 = ssub.s32 %s10, 2
    %s17 = sadd.s32 %s10, 1
    %s18 = ssub.s32 %s10, %s17
    %p19 = scmp.eq.s32.totalorder %s18, 0
    %s21 = sadd.s32 %s20, 1
    %s22 = scalar_select %p19, %s20, %s21
    %p25 = pneg %p19
    %p26 = scmp.eq.s32.totalorder %s10, 1
    %p27 = por %p25, %p26
    %p28 = scmp.ne.s32.totalorder %s20, %s23
    %p29 = scmp.eq.s32.totalorder %s10, 0
    %p30 = por %p28, %p29
    %p31 = scmp.ne.s32.totalorder %s20, %s23
    %p32 = scmp.eq.s32.totalorder %s15, 1
    %p33 = por %p31, %p32
    %p34 = scmp.ne.s32.totalorder %s23, %s24
    %p35 = scmp.eq.s32.totalorder %s15, 0
    %p36 = por %p34, %p35
    %p37 = scmp.ne.s32.totalorder %s23, %s24
    %p38 = scmp.eq.s32.totalorder %s16, 1
    %p39 = por %p37, %p38
    %p41 = scmp.ne.s32.totalorder %s24, %s40
    %p42 = scmp.eq.s32.totalorder %s16, 0
    %p43 = por %p41, %p42
    %s44 = ssub.s32 %s10, %s17
    %p45 = scmp.eq.s32.totalorder %s44, 0
    %s47 = sadd.s32 %s46, 1
    %s48 = scalar_select %p45, %s46, %s47
    %p51 = pneg %p45
    %p52 = scmp.eq.s32.totalorder %s10, 1
    %p53 = por %p51, %p52
    %p54 = scmp.ne.s32.totalorder %s46, %s49
    %p55 = scmp.eq.s32.totalorder %s10, 0
    %p56 = por %p54, %p55
    %p57 = scmp.ne.s32.totalorder %s46, %s49
    %p58 = scmp.eq.s32.totalorder %s15, 1
    %p59 = por %p57, %p58
    %p60 = scmp.ne.s32.totalorder %s49, %s50
    %p61 = scmp.eq.s32.totalorder %s15, 0
    %p62 = por %p60, %p61
    %p63 = scmp.ne.s32.totalorder %s49, %s50
    %p64 = scmp.eq.s32.totalorder %s16, 1
    %p65 = por %p63, %p64
    %p67 = scmp.ne.s32.totalorder %s50, %s66
    %p68 = scmp.eq.s32.totalorder %s16, 0
    %p69 = por %p67, %p68
    %s70 = ssub.s32 %s10, %s17
    %p71 = scmp.eq.s32.totalorder %s70, 0
    %s73 = sadd.s32 %s72, 1
    %s74 = scalar_select %p71, %s72, %s73
    %p77 = pneg %p71
    %p78 = scmp.eq.s32.totalorder %s10, 1
    %p79 = por %p77, %p78
    %p80 = scmp.ne.s32.totalorder %s72, %s75
    %p81 = scmp.eq.s32.totalorder %s10, 0
    %p82 = por %p80, %p81
    %p83 = scmp.ne.s32.totalorder %s72, %s75
    %p84 = scmp.eq.s32.totalorder %s15, 1
    %p85 = por %p83, %p84
    %p86 = scmp.ne.s32.totalorder %s75, %s76
    %p87 = scmp.eq.s32.totalorder %s15, 0
    %p88 = por %p86, %p87
    %p89 = scmp.ne.s32.totalorder %s75, %s76
    %p90 = scmp.eq.s32.totalorder %s16, 1
    %p91 = por %p89, %p90
    %p93 = scmp.ne.s32.totalorder %s76, %s92
    %p94 = scmp.eq.s32.totalorder %s16, 0
    %p95 = por %p93, %p94
    %s96 = ssub.s32 %s10, %s17
    %p97 = scmp.eq.s32.totalorder %s96, 0
    %s99 = sadd.s32 %s98, 1
    %s100 = scalar_select %p97, %s98, %s99
    %p103 = pneg %p97
    %p104 = scmp.eq.s32.totalorder %s10, 1
    %p105 = por %p103, %p104
    %p106 = scmp.ne.s32.totalorder %s98, %s101
    %p107 = scmp.eq.s32.totalorder %s10, 0
    %p108 = por %p106, %p107
    %p109 = scmp.ne.s32.totalorder %s98, %s101
    %p110 = scmp.eq.s32.totalorder %s15, 1
    %p111 = por %p109, %p110
    %p112 = scmp.ne.s32.totalorder %s101, %s102
    %p113 = scmp.eq.s32.totalorder %s15, 0
    %p114 = por %p112, %p113
    %p115 = scmp.ne.s32.totalorder %s101, %s102
    %p116 = scmp.eq.s32.totalorder %s16, 1
    %p117 = por %p115, %p116
    %p119 = scmp.ne.s32.totalorder %s102, %s118
    %p120 = scmp.eq.s32.totalorder %s16, 0
    %p121 = por %p119, %p120
    %s122 = ssub.s32 %s10, %s17
    %p123 = scmp.eq.s32.totalorder %s122, 0
    %s125 = sadd.s32 %s124, 1
    %s126 = scalar_select %p123, %s124, %s125
    %p129 = pneg %p123
    %p130 = scmp.eq.s32.totalorder %s10, 1
    %p131 = por %p129, %p130
    %p132 = scmp.ne.s32.totalorder %s124, %s127
    %p133 = scmp.eq.s32.totalorder %s10, 0
    %p134 = por %p132, %p133
    %p135 = scmp.ne.s32.totalorder %s124, %s127
    %p136 = scmp.eq.s32.totalorder %s15, 1
    %p137 = por %p135, %p136
    %p138 = scmp.ne.s32.totalorder %s127, %s128
    %p139 = scmp.eq.s32.totalorder %s15, 0
    %p140 = por %p138, %p139
    %p141 = scmp.ne.s32.totalorder %s127, %s128
    %p142 = scmp.eq.s32.totalorder %s16, 1
    %p143 = por %p141, %p142
    %p145 = scmp.ne.s32.totalorder %s128, %s144
    %p146 = scmp.eq.s32.totalorder %s16, 0
    %p147 = por %p145, %p146
    %p148 = scmp.le.s32.totalorder 1, %s10
    %p149 = scmp.lt.s32.totalorder %s10, 3
    %p150 = pnand %p148, %p149
    %p151 = pneg %p150
    // Predicated region
    $region9: #{bertscore_forward.1} parent=5 // pred_check
      _
    $region10: #{bertscore_forward.1} parent=5 // pred_check_branch
      %153 = sbr.rel (%p150) target = $region12
    $region11: #{bertscore_forward.1} parent=5 // pred_region
      %s154 = ssub.s32 %s10, 1
    $region12: #{bertscore_forward.1} parent=5 // pred_fallthru
      _
    %p155 = scmp.lt.s32.totalorder %s10, 2
    // Predicated region
    $region13: #{bertscore_forward.1} parent=5 // pred_check
      %p156 = pneg %p155
    $region14: #{bertscore_forward.1} parent=5 // pred_check_branch
      %158 = sbr.rel (%p156) target = $region16
    $region15: #{bertscore_forward.1} parent=5 // pred_region
      // Predicated region
      $region17: #{bertscore_forward.1} parent=15 // pred_check
        %p159 = pneg %p30
      $region18: #{bertscore_forward.1} parent=15 // pred_check_branch
        %161 = sbr.rel (%p159) target = $region20
      $region19: #{bertscore_forward.1} parent=15 // pred_region
        %s162 = smul.u32 2, %s10
        %p163 = scmp.lt.s32.totalorder %s162, 3
        %s164 = scalar_select %p163, %s162, 3
        %s165 = smul.addr %s164, 2
        %s166 = smul.addr %s165, 4
        %s167 = scalar_lea.vmem %s0, %s166
        %s168 = smul.u32 2, %s10
      $region20: #{bertscore_forward.1} parent=15 // pred_fallthru
        _
      // Predicated region
      $region21: #{bertscore_forward.1} parent=15 // pred_check
        %p169 = pneg %p56
      $region22: #{bertscore_forward.1} parent=15 // pred_check_branch
        %171 = sbr.rel (%p169) target = $region24
      $region23: #{bertscore_forward.1} parent=15 // pred_region
        %s172 = smul.u32 2, %s10
        %p173 = scmp.lt.s32.totalorder %s172, 3
        %s174 = scalar_select %p173, %s172, 3
        %s175 = smul.addr %s174, 16
        %s176 = smul.addr %s175, 4
        %s177 = scalar_lea.vmem %s1, %s176
        %s178 = smul.u32 2, %s10
      $region24: #{bertscore_forward.1} parent=15 // pred_fallthru
        _
      // Predicated region
      $region25: #{bertscore_forward.1} parent=15 // pred_check
        %p179 = pneg %p82
      $region26: #{bertscore_forward.1} parent=15 // pred_check_branch
        %181 = sbr.rel (%p179) target = $region28
      $region27: #{bertscore_forward.1} parent=15 // pred_region
        %s182 = smul.u32 2, %s10
        %p183 = scmp.lt.s32.totalorder %s182, 3
        %s184 = scalar_select %p183, %s182, 3
        %s185 = scalar_lea.vmem %s2, %s184
        %s186 = smul.u32 2, %s10
      $region28: #{bertscore_forward.1} parent=15 // pred_fallthru
        _
      // Predicated region
      $region29: #{bertscore_forward.1} parent=15 // pred_check
        %p187 = pneg %p108
      $region30: #{bertscore_forward.1} parent=15 // pred_check_branch
        %189 = sbr.rel (%p187) target = $region32
      $region31: #{bertscore_forward.1} parent=15 // pred_region
        %s190 = smul.u32 2, %s10
        %p191 = scmp.lt.s32.totalorder %s190, 3
        %s192 = scalar_select %p191, %s190, 3
        %s193 = scalar_lea.vmem %s3, %s192
        %s194 = smul.u32 2, %s10
      $region32: #{bertscore_forward.1} parent=15 // pred_fallthru
        _
    $region16: #{bertscore_forward.1} parent=5 // pred_fallthru
      _
    %p195 = scmp.le.s32.totalorder 1, %s10
    %p196 = scmp.lt.s32.totalorder %s10, 3
    %p197 = pnand %p195, %p196
    %p198 = pneg %p197
    // Predicated region
    $region33: #{bertscore_forward.1} parent=5 // pred_check
      _
    $region34: #{bertscore_forward.1} parent=5 // pred_check_branch
      %200 = sbr.rel (%p197) target = $region36
    $region35: #{bertscore_forward.1} parent=5 // pred_region
      %s201 = ssub.s32 %s10, 1
      %s202 = smul.u32 2, %s15
      %p203 = scmp.lt.s32.totalorder %s202, 3
      %s204 = scalar_select %p203, %s202, 3
      %s205 = smul.addr %s204, 2
      %s206 = smul.addr %s205, 4
      %s207 = scalar_lea.vmem %s0, %s206
      %p208 = pneg %p36
      %p209 = pneg %p33
      %s210 = smul.u32 2, %s15
      %p211 = scmp.lt.s32.totalorder %s210, 3
      %s212 = scalar_select %p211, %s210, 3
      %s213 = smul.addr %s212, 16
      %s214 = smul.addr %s213, 4
      %s215 = scalar_lea.vmem %s1, %s214
      %p216 = pneg %p62
      %p217 = pneg %p59
      %s218 = smul.u32 2, %s15
      %p219 = scmp.lt.s32.totalorder %s218, 3
      %s220 = scalar_select %p219, %s218, 3
      %s221 = scalar_lea.vmem %s2, %s220
      %p222 = pneg %p88
      %p223 = pneg %p85
      %s224 = smul.u32 2, %s15
      %p225 = scmp.lt.s32.totalorder %s224, 3
      %s226 = scalar_select %p225, %s224, 3
      %s227 = scalar_lea.vmem %s3, %s226
      %p228 = pneg %p114
      %p229 = pneg %p111
      %p230 = pneg %p140
      %p231 = pneg %p137
      %p232 = scmp.lt.s32.totalorder %s15, 1
      %s233 = scalar_select %p232, %s15, 1
      %s234 = smul.addr %s233, 2
      %s235 = scalar_lea.vmem %s4, %s234
      %s236 = smul.u32 2, %s15
      %p237 = scmp.lt.s32.totalorder %s236, 3
      %s238 = scalar_select %p237, %s236, 3
      %s239 = smul.addr %s238, 2
      %s240 = smul.addr %s239, 4
      %s241 = scalar_lea.vmem %s0, %s240
      %s242 = smul.u32 2, %s15
      %s243 = smul.u32 2, %s15
      %p244 = scmp.lt.s32.totalorder %s243, 3
      %s245 = scalar_select %p244, %s243, 3
      %s246 = smul.addr %s245, 16
      %s247 = smul.addr %s246, 4
      %s248 = scalar_lea.vmem %s1, %s247
      %s249 = smul.u32 2, %s15
      %s250 = smul.u32 2, %s15
      %p251 = scmp.lt.s32.totalorder %s250, 3
      %s252 = scalar_select %p251, %s250, 3
      %s253 = scalar_lea.vmem %s2, %s252
      %s254 = smul.u32 2, %s15
      %s255 = smul.u32 2, %s15
      %p256 = scmp.lt.s32.totalorder %s255, 3
      %s257 = scalar_select %p256, %s255, 3
      %s258 = scalar_lea.vmem %s3, %s257
      %s259 = smul.u32 2, %s15
      %p260 = scmp.lt.s32.totalorder %s15, 1
      %s261 = scalar_select %p260, %s15, 1
      %s262 = smul.addr %s261, 2
      %s263 = scalar_lea.vmem %s4, %s262
      %v264 = vld [vmem:[%s241] sm:$0xf]
      %v265 = vld [vmem:[%s241 + $0x4] sm:$0xf]
      %v266 = vld [vmem:[%s241 + $0x8] sm:$0xf]
      %v267 = vld [vmem:[%s241 + $0xc] sm:$0xf]
      %v268 = vld [vmem:[%s248] sm:$0xf]
      %v269 = vld [vmem:[%s248 + $0x4] sm:$0xf]
      %v270 = vld [vmem:[%s248 + $0x8] sm:$0xf]
      %v271 = vld [vmem:[%s248 + $0xc] sm:$0xf]
      %v272 = vld [vmem:[%s248 + $0x10] sm:$0xf]
      %v273 = vld [vmem:[%s248 + $0x14] sm:$0xf]
      %v274 = vld [vmem:[%s248 + $0x18] sm:$0xf]
      %v275 = vld [vmem:[%s248 + $0x1c] sm:$0xf]
      %v276 = vld [vmem:[%s248 + $0x20] sm:$0xf]
      %v277 = vld [vmem:[%s248 + $0x24] sm:$0xf]
      %v278 = vld [vmem:[%s248 + $0x28] sm:$0xf]
      %v279 = vld [vmem:[%s248 + $0x2c] sm:$0xf]
      %v280 = vld [vmem:[%s248 + $0x30] sm:$0xf]
      %v281 = vld [vmem:[%s248 + $0x34] sm:$0xf]
      %v282 = vld [vmem:[%s248 + $0x38] sm:$0xf]
      %v283 = vld [vmem:[%s248 + $0x3c] sm:$0xf]
      %v284 = vld [vmem:[%s248 + $0x40] sm:$0xf]
      %v285 = vld [vmem:[%s248 + $0x44] sm:$0xf]
      %v286 = vld [vmem:[%s248 + $0x48] sm:$0xf]
      %v287 = vld [vmem:[%s248 + $0x4c] sm:$0xf]
      %v288 = vld [vmem:[%s248 + $0x50] sm:$0xf]
      %v289 = vld [vmem:[%s248 + $0x54] sm:$0xf]
      %v290 = vld [vmem:[%s248 + $0x58] sm:$0xf]
      %v291 = vld [vmem:[%s248 + $0x5c] sm:$0xf]
      %v292 = vld [vmem:[%s248 + $0x60] sm:$0xf]
      %v293 = vld [vmem:[%s248 + $0x64] sm:$0xf]
      %v294 = vld [vmem:[%s248 + $0x68] sm:$0xf]
      %v295 = vld [vmem:[%s248 + $0x6c] sm:$0xf]
      %v296 = vld [vmem:[%s248 + $0x70] sm:$0xf]
      %v297 = vld [vmem:[%s248 + $0x74] sm:$0xf]
      %v298 = vld [vmem:[%s248 + $0x78] sm:$0xf]
      %v299 = vld [vmem:[%s248 + $0x7c] sm:$0xf]
      %v302 = vunpack.c.l.b16 %v264
      %v303 = vunpack.c.l.b16 %v265
      %v304 = vpack.c.b16 %v303, %v302
      %v322 = vunpack.c.l.b16 %v268
      %v323 = vunpack.c.l.b16 %v269
      %v324 = vunpack.c.l.b16 %v270
      %v325 = vunpack.c.l.b16 %v271
      %v326 = vunpack.c.l.b16 %v272
      %v327 = vunpack.c.l.b16 %v273
      %v328 = vunpack.c.l.b16 %v274
      %v329 = vunpack.c.l.b16 %v275
      %v330 = vunpack.c.l.b16 %v276
      %v331 = vunpack.c.l.b16 %v277
      %v332 = vunpack.c.l.b16 %v278
      %v333 = vunpack.c.l.b16 %v279
      %v334 = vunpack.c.l.b16 %v280
      %v335 = vunpack.c.l.b16 %v281
      %v336 = vunpack.c.l.b16 %v282
      %v337 = vunpack.c.l.b16 %v283
      %v338 = vpack.c.b16 %v323, %v322
      %v339 = vpack.c.b16 %v325, %v324
      %v340 = vpack.c.b16 %v327, %v326
      %v341 = vpack.c.b16 %v329, %v328
      %v342 = vpack.c.b16 %v331, %v330
      %v343 = vpack.c.b16 %v333, %v332
      %v344 = vpack.c.b16 %v335, %v334
      %v345 = vpack.c.b16 %v337, %v336
      %354 = vmatpush.bf16.msra.mxu0 %v345
      %355 = vmatpush.bf16.msra.mxu0 %v344
      %356 = vmatpush.bf16.msra.mxu0 %v343
      %357 = vmatpush.bf16.msra.mxu0 %v342
      %358 = vmatpush.bf16.msra.mxu0 %v341
      %359 = vmatpush.bf16.msra.mxu0 %v340
      %360 = vmatpush.bf16.msra.mxu0 %v339
      %361 = vmatpush.bf16.msra.mxu0 %v338
      %362 = vmatmul.bf16.gmra.mxu0 %v304
      %v363 = vpop.f32.mrf.mxu0
      %v364 = vadd.f32 0.0, %v363
      %v365 = vpop.f32.mrf.mxu0
      %v366 = vadd.f32 0.0, %v365
      %367 = vdwg.mxu0
      %v370 = vunpack.c.l.b16 %v266
      %v371 = vunpack.c.l.b16 %v267
      %v372 = vpack.c.b16 %v371, %v370
      %v390 = vunpack.c.l.b16 %v284
      %v391 = vunpack.c.l.b16 %v285
      %v392 = vunpack.c.l.b16 %v286
      %v393 = vunpack.c.l.b16 %v287
      %v394 = vunpack.c.l.b16 %v288
      %v395 = vunpack.c.l.b16 %v289
      %v396 = vunpack.c.l.b16 %v290
      %v397 = vunpack.c.l.b16 %v291
      %v398 = vunpack.c.l.b16 %v292
      %v399 = vunpack.c.l.b16 %v293
      %v400 = vunpack.c.l.b16 %v294
      %v401 = vunpack.c.l.b16 %v295
      %v402 = vunpack.c.l.b16 %v296
      %v403 = vunpack.c.l.b16 %v297
      %v404 = vunpack.c.l.b16 %v298
      %v405 = vunpack.c.l.b16 %v299
      %v406 = vpack.c.b16 %v391, %v390
      %v407 = vpack.c.b16 %v393, %v392
      %v408 = vpack.c.b16 %v395, %v394
      %v409 = vpack.c.b16 %v397, %v396
      %v410 = vpack.c.b16 %v399, %v398
      %v411 = vpack.c.b16 %v401, %v400
      %v412 = vpack.c.b16 %v403, %v402
      %v413 = vpack.c.b16 %v405, %v404
      %422 = vmatpush.bf16.msra.mxu0 %v413
      %423 = vmatpush.bf16.msra.mxu0 %v412
      %424 = vmatpush.bf16.msra.mxu0 %v411
      %425 = vmatpush.bf16.msra.mxu0 %v410
      %426 = vmatpush.bf16.msra.mxu0 %v409
      %427 = vmatpush.bf16.msra.mxu0 %v408
      %428 = vmatpush.bf16.msra.mxu0 %v407
      %429 = vmatpush.bf16.msra.mxu0 %v406
      %430 = vmatmul.bf16.gmra.mxu0 %v372
      %v431 = vpop.f32.mrf.mxu0
      %v432 = vadd.f32 0.0, %v431
      %v433 = vpop.f32.mrf.mxu0
      %v434 = vadd.f32 0.0, %v433
      %435 = vdwg.mxu0
      %436 = vmax.xlane.f32.xlu0 %v364
      %v437 = vpop.xlane.xlu0 %436
      %438 = vmax.xlane.f32.xlu0 %v366
      %v439 = vpop.xlane.xlu0 %438
      %440 = vmax.xlane.f32.xlu0 %v432
      %v441 = vpop.xlane.xlu0 %440
      %442 = vmax.xlane.f32.xlu0 %v434
      %v443 = vpop.xlane.xlu0 %442
      %v444 = vmax.f32 %v364, %v366
      %v445 = vrot.slane %v444, 4
      %v446 = vmax.f32 %v444, %v445
      %v447 = vrot.slane %v446, 2
      %v448 = vmax.f32 %v446, %v447
      %v449 = vrot.slane %v448, 1
      %v450 = vmax.f32 %v448, %v449
      %v451 = vmax.f32 %v432, %v434
      %v452 = vrot.slane %v451, 4
      %v453 = vmax.f32 %v451, %v452
      %v454 = vrot.slane %v453, 2
      %v455 = vmax.f32 %v453, %v454
      %v456 = vrot.slane %v455, 1
      %v457 = vmax.f32 %v455, %v456
      %v458 = vld [vmem:[%s253] sm:$0x1]
      %v459 = vld [vmem:[%s253 + $0x1] sm:$0x1]
      %v460 = vld [vmem:[%s258] sm:$0x1]
      %v461 = vld [vmem:[%s258 + $0x1] sm:$0x1]
      %v464 = vperm.slane %v458, 0
      %v465 = vperm.slane %v459, 0
      %v466 = vlaneseq
      %v467 = vshrl.u32 %v466, 7
      %469 = vset.pattern.permute.xlu0 %v467
      %470 = vperm.xlu0 %469, %v464
      %v471 = vpop.permute.xlu0 %470
      %v472 = vlaneseq
      %v473 = vshrl.u32 %v472, 7
      %v474 = vadd.s32 %v473, 8
      %475 = vset.pattern.permute.xlu0 %v474
      %476 = vperm.xlu0 %475, %v464
      %v477 = vpop.permute.xlu0 %476
      %v478 = vlaneseq
      %v479 = vshrl.u32 %v478, 7
      %481 = vset.pattern.permute.xlu0 %v479
      %482 = vperm.xlu0 %481, %v465
      %v483 = vpop.permute.xlu0 %482
      %v484 = vlaneseq
      %v485 = vshrl.u32 %v484, 7
      %v486 = vadd.s32 %v485, 8
      %487 = vset.pattern.permute.xlu0 %v486
      %488 = vperm.xlu0 %487, %v465
      %v489 = vpop.permute.xlu0 %488
      %v494 = vmul.f32 %v437, %v471
      %v495 = vmul.f32 %v439, %v477
      %v496 = vmul.f32 %v441, %v483
      %v497 = vmul.f32 %v443, %v489
      %502 = vset.pattern.permute.xlu0 0
      %503 = vperm.xlu0 %502, %v494
      %v504 = vpop.permute.xlu0 %503
      %505 = vset.pattern.permute.xlu0 0
      %506 = vperm.xlu0 %505, %v495
      %v507 = vpop.permute.xlu0 %506
      %508 = vset.pattern.permute.xlu0 0
      %509 = vperm.xlu0 %508, %v496
      %v510 = vpop.permute.xlu0 %509
      %511 = vset.pattern.permute.xlu0 0
      %512 = vperm.xlu0 %511, %v497
      %v513 = vpop.permute.xlu0 %512
      %v514 = vlaneseq
      %v515 = vand.u32 %v514, 127
      %v516 = vperm.slane %v504, %v515
      %v517 = vadd.s32 %v515, 4294967288
      %v518 = vperm.slane %v507, %v517
      %vm519 = vcmask 130112
      %v520 = vsel %vm519, %v518, %v516
      %v521 = vperm.slane %v510, %v515
      %v522 = vperm.slane %v513, %v517
      %v523 = vsel %vm519, %v522, %v521
      %vm524 = vcmask 1041409
      %v525 = vsel %vm524, %v523, %v520
      %vm527 = vcmask 123904
      %v528 = vsel %vm527, %v525, 0.0
      %529 = vadd.xlane.f32.xlu0 %v528
      %v530 = vpop.xlane.xlu0 %529
      %v531 = vmul.f32 %v450, %v460
      %v532 = vmul.f32 %v457, %v461
      %v535 = vrot.slane %v532, 7
      %v536 = vsel %vm524, %v535, %v531
      %vm538 = vcmask 1041408
      %v539 = vsel %vm538, %v536, 0.0
      %540 = vadd.xlane.f32.xlu0 %v539
      %v541 = vpop.xlane.xlu0 %540
      %v542 = vadd.f32 %v530, %v541
      %vm543 = vcmp.gt.f32.partialorder %v542, 0.0
      %v544 = vsel %vm543, %v542, 1.0
      %v545 = vmul.f32 %v530, 2.0
      %v546 = vmul.f32 %v545, %v541
      %v547 = vrcp.pop %v544
      %v548 = vmul.f32 %v544, %v547
      %v549 = vsub.f32 1.0, %v548
      %v550 = vmul.f32 %v547, %v549
      %v551 = vadd.f32 %v547, %v550
      %vm552 = vweird.f32 %v544
      %vm553 = vweird.f32 %v547
      %vm554 = vmor %vm552, %vm553
      %v555 = vsel %vm554, %v547, %v551
      %v556 = vand.u32 2147483647, %v544
      %vm557 = vcmp.eq.f32.partialorder %v556, 8.507059e+37
      %v558 = vand.u32 %v544, 2147483648
      %v559 = vor.u32 1.1754944e-38, %v558
      %v560 = vsel %vm557, %v559, %v555
      %v561 = vmul.f32 %v546, %v560
      %v562 = vsel %vm543, %v561, 0.0
      %vm563 = vcmp.eq.s32.totalorder %v515, 0
      %vm564 = vcmp.eq.s32.totalorder %v515, 1
      %vm565 = vcmp.eq.s32.totalorder %v515, 2
      %v566 = vsel %vm565, %v562, 0.0
      %v567 = vsel %vm564, %v541, %v566
      %v568 = vsel %vm563, %v530, %v567
      %569 = vst [vmem:[%s263] sm:$0x3] %v568
      %p570 = scmp.lt.s32.totalorder %s15, 1
      %s571 = scalar_select %p570, %s15, 1
      %s572 = smul.addr %s571, 2
      %s573 = scalar_lea.vmem %s4, %s572
      // Predicated region
      $region37: #{bertscore_forward.1} parent=35 // pred_check
        %p574 = pneg %p137
      $region38: #{bertscore_forward.1} parent=35 // pred_check_branch
        %576 = sbr.rel (%p574) target = $region40
      $region39: #{bertscore_forward.1} parent=35 // pred_region
        _
      $region40: #{bertscore_forward.1} parent=35 // pred_fallthru
        _
    $region36: #{bertscore_forward.1} parent=5 // pred_fallthru
      _
    %p577 = scmp.le.s32.totalorder 2, %s10
    // Predicated region
    $region41: #{bertscore_forward.1} parent=5 // pred_check
      %p578 = pneg %p577
    $region42: #{bertscore_forward.1} parent=5 // pred_check_branch
      %580 = sbr.rel (%p578) target = $region44
    $region43: #{bertscore_forward.1} parent=5 // pred_region
      %s581 = ssub.s32 %s10, 2
      // Predicated region
      $region45: #{bertscore_forward.1} parent=43 // pred_check
        %p582 = pneg %p143
      $region46: #{bertscore_forward.1} parent=43 // pred_check_branch
        %584 = sbr.rel (%p582) target = $region48
      $region47: #{bertscore_forward.1} parent=43 // pred_region
        %p585 = scmp.lt.s32.totalorder %s16, 1
        %s586 = scalar_select %p585, %s16, 1
        %s587 = smul.addr %s586, 2
        %s588 = scalar_lea.vmem %s4, %s587
      $region48: #{bertscore_forward.1} parent=43 // pred_fallthru
        _
    $region44: #{bertscore_forward.1} parent=5 // pred_fallthru
      _
  $region6: #{bertscore_forward.1} parent=0 // loop_footer
    %s14 = sadd.s32 1, %s10
  $region7: #{bertscore_forward.1} parent=0 // loop_footer_branch
    %9 = sbr.rel target = $region3
  $region8: #{bertscore_forward.1} parent=0 // loop_exit
    _

</llo_original>
